<compile_context>
chip_gen: v7x
topology: tpu7x:2x2x1
jax: 0.10.0
libtpu: 0.0.40
codegen_flags: <defaults>
</compile_context>

<pallas_src>
import functools
import numpy as np

import jax
import jax.numpy as jnp
from jax.experimental import pallas as pl
from jax.experimental.pallas import tpu as pltpu


def _round_up(x, n):
    return ((x + n - 1) // n) * n


def _vmem_padded_bytes(shape, dtype_bytes=4):
    """Rough VMEM footprint of an array (lane pad to 128, sublane pad to 8)."""
    s = [int(v) for v in shape]
    if not s:
        return dtype_bytes
    s[-1] = _round_up(s[-1], 128)
    if len(s) >= 2:
        s[-2] = _round_up(s[-2], 8)
    n = 1
    for v in s:
        n *= v
    return n * dtype_bytes


# ----------------------------------------------------------------------------
# Fused kernel: one grid step = one (batch_tile, flow) pair.
# Layout is feature-major: activations are (features, tile_m) so the batch is
# the lane axis.  The running activation lives in a VMEM scratch; log_det and
# the zs slab are flow-invariant output blocks (resident across the flow axis).
# ----------------------------------------------------------------------------
def _fused_flow_kernel(par_ref, x_ref,
                       w1_ref, b1_ref, w2_ref, b2_ref, w3_ref, b3_ref,
                       zs_ref, ld_ref, x_scr,
                       *, hd, slot, weights_resident):
    f = pl.program_id(1)

    # Resident weights: full stack in VMEM, index the flow axis in-kernel.
    # Fallback: per-flow blocks pipelined by the BlockSpec (leading dim == 1).
    wf = (lambda r: r[f]) if weights_resident else (lambda r: r[0])

    @pl.when(f == 0)
    def _():
        x_scr[...] = x_ref[...]
        ld_ref[...] = jnp.zeros_like(ld_ref)

    # Exact even/odd de-interleave of the running activation: static sublane
    # slices (pure data movement, never touches the MXU -> pass-through
    # coordinates stay bit-exact).
    rows_e = [x_scr[pl.ds(2 * j, 1), :] for j in range(hd)]
    rows_o = [x_scr[pl.ds(2 * j + 1, 1), :] for j in range(hd)]
    u_even = rows_e[0] if hd == 1 else jnp.concatenate(rows_e, axis=0)
    u_odd = rows_o[0] if hd == 1 else jnp.concatenate(rows_o, axis=0)

    par = par_ref[f]                              # per-flow parity (SMEM scalar)
    x0 = jnp.where(par == 0, u_even, u_odd)       # conditioning / pass-through half
    x1 = jnp.where(par == 0, u_odd, u_even)       # transformed half

    # Fused s|t MLP (block-diagonal weights, transposed layout, f32 accumulate).
    # TODO(synk): split s/t matmuls and use bf16 MXU operands once 2*nh_pad > 128.
    h = jnp.dot(wf(w1_ref), x0, preferred_element_type=jnp.float32) + wf(b1_ref)
    h = jnp.where(h > 0, h, 0.2 * h)              # LeakyReLU(0.2)
    h = jnp.dot(wf(w2_ref), h, preferred_element_type=jnp.float32) + wf(b2_ref)
    h = jnp.where(h > 0, h, 0.2 * h)
    st = jnp.dot(wf(w3_ref), h, preferred_element_type=jnp.float32) + wf(b3_ref)
    s = st[:hd, :]
    t = st[hd:, :]

    # Affine coupling + parity-aware re-assembly (exact VPU selects).
    z1 = jnp.exp(s) * x1 + t
    z_lo = jnp.where(par == 0, x0, z1)
    z_hi = jnp.where(par == 0, z1, x0)
    z = jnp.concatenate([z_lo, z_hi], axis=0)     # (dim, tile_m)

    x_scr[...] = z                                # running activation stays in VMEM

    # Lane-dense, sublane-aligned slot store into the flow-invariant zs slab.
    if slot > 2 * hd:
        z_store = jnp.concatenate(
            [z, jnp.zeros((slot - 2 * hd, z.shape[1]), z.dtype)], axis=0)
    else:
        z_store = z
    off = pl.multiple_of(f * slot, slot)
    zs_ref[pl.ds(off, slot), :] = z_store

    ld_ref[...] = ld_ref[...] + jnp.sum(s, axis=0, keepdims=True)


# ----------------------------------------------------------------------------
# Host-side parameter fusion / stacking (runs once; layout plumbing only).
# Produces transposed (feature-major) fused weights, hidden width padded with
# exact zeros (LeakyReLU(0)=0) to a multiple of 8 sublanes.
# ----------------------------------------------------------------------------
def _stack_fused_params_T(flow_params, nh_p):
    W1, B1, W2, B2, W3, B3 = [], [], [], [], [], []
    for p in flow_params:
        s_w1 = np.asarray(p["s_w1"], np.float32)
        hd, nh = s_w1.shape

        def padT_w1(w):                        # (hd, nh) -> (nh_p, hd)
            out = np.zeros((nh_p, hd), np.float32)
            out[:nh, :] = np.asarray(w, np.float32).T
            return out

        def padT_b(b):                         # (1, nh) -> (nh_p, 1)
            out = np.zeros((nh_p, 1), np.float32)
            out[:nh, 0] = np.asarray(b, np.float32).reshape(-1)
            return out

        def padT_w2(w):                        # (nh, nh) -> (nh_p, nh_p)
            out = np.zeros((nh_p, nh_p), np.float32)
            out[:nh, :nh] = np.asarray(w, np.float32).T
            return out

        def padT_w3(w):                        # (nh, hd) -> (hd, nh_p)
            out = np.zeros((hd, nh_p), np.float32)
            out[:, :nh] = np.asarray(w, np.float32).T
            return out

        z_nn = np.zeros((nh_p, nh_p), np.float32)
        z_hn = np.zeros((hd, nh_p), np.float32)

        W1.append(np.concatenate([padT_w1(s_w1), padT_w1(p["t_w1"])], axis=0))
        B1.append(np.concatenate([padT_b(p["s_b1"]), padT_b(p["t_b1"])], axis=0))
        W2.append(np.block([[padT_w2(p["s_w2"]), z_nn],
                            [z_nn, padT_w2(p["t_w2"])]]))
        B2.append(np.concatenate([padT_b(p["s_b2"]), padT_b(p["t_b2"])], axis=0))
        W3.append(np.block([[padT_w3(p["s_w3"]), z_hn],
                            [z_hn, padT_w3(p["t_w3"])]]))
        B3.append(np.concatenate(
            [np.asarray(p["s_b3"], np.float32).reshape(hd, 1),
             np.asarray(p["t_b3"], np.float32).reshape(hd, 1)], axis=0))

    stack = lambda xs: jnp.asarray(np.stack(xs, axis=0))
    return tuple(map(stack, (W1, B1, W2, B2, W3, B3)))


# ----------------------------------------------------------------------------
# NormalizingFlow.forward: returns (zs, log_det), matching the PyTorch module.
# ----------------------------------------------------------------------------
def normalizing_flow_forward(x, flow_params, parities, *, batch_tile=1024):
    m, dim = x.shape
    assert dim % 2 == 0, "AffineHalfFlow requires an even feature dimension"
    hd = dim // 2
    n_flows = len(flow_params)
    nh = int(np.asarray(flow_params[0]["s_w1"]).shape[1])
    nh_p = _round_up(nh, 8)
    slot = _round_up(dim, 8)          # sublane-aligned per-flow slot in the zs slab

    w1, b1, w2, b2, w3, b3 = _stack_fused_params_T(flow_params, nh_p)
    weight_arrays = (w1, b1, w2, b2, w3, b3)
    par = jnp.asarray(np.asarray(parities, dtype=np.int32))

    # Batch tiling: the batch is the lane axis, so tiles are multiples of 128.
    m128 = _round_up(m, 128)
    tile_m = min(_round_up(batch_tile, 128), m128)
    if tile_m >= m128 and m128 >= 256:
        # keep >=2 batch tiles so the "parallel" axis can occupy both v7x cores
        tile_m = _round_up((m + 1) // 2, 128)
    m_pad = _round_up(m, tile_m)

    x_t = jnp.pad(x.astype(jnp.float32).T, ((0, 0), (0, m_pad - m)))

    # VMEM budget: keep the whole per-flow weight stack resident when it fits
    # comfortably under v7x's 64 MiB; otherwise fall back to per-flow blocks.
    weights_vmem = sum(_vmem_padded_bytes(np.shape(a)) for a in weight_arrays)
    weights_resident = 2 * weights_vmem <= 24 * 1024 * 1024
    tile_vmem = (_vmem_padded_bytes((dim, tile_m))
                 + _vmem_padded_bytes((n_flows * slot, tile_m))
                 + _vmem_padded_bytes((1, tile_m))
                 + 3 * _vmem_padded_bytes((2 * nh_p, tile_m)))
    vmem_limit = int(min(56 * 1024 * 1024,
                         max(32 * 1024 * 1024,
                             2 * weights_vmem + 4 * tile_vmem + (4 << 20))))

    if weights_resident:
        w_specs = [pl.BlockSpec(tuple(a.shape), lambda b, f, p: (0, 0, 0))
                   for a in weight_arrays]
    else:
        w_specs = [pl.BlockSpec((1,) + tuple(a.shape[1:]),
                                lambda b, f, p: (f, 0, 0))
                   for a in weight_arrays]

    grid = (m_pad // tile_m, n_flows)
    kernel = functools.partial(_fused_flow_kernel, hd=hd, slot=slot,
                               weights_resident=weights_resident)

    zs_t, ld_t = pl.pallas_call(
        kernel,
        grid_spec=pltpu.PrefetchScalarGridSpec(
            num_scalar_prefetch=1,                       # parities -> SMEM
            grid=grid,
            in_specs=[pl.BlockSpec((dim, tile_m), lambda b, f, p: (0, b))]
                     + w_specs,
            out_specs=[
                pl.BlockSpec((n_flows * slot, tile_m), lambda b, f, p: (0, b)),
                pl.BlockSpec((1, tile_m), lambda b, f, p: (0, b)),
            ],
            scratch_shapes=[pltpu.VMEM((dim, tile_m), jnp.float32)],
        ),
        out_shape=(
            jax.ShapeDtypeStruct((n_flows * slot, m_pad), jnp.float32),
            jax.ShapeDtypeStruct((1, m_pad), jnp.float32),
        ),
        compiler_params=pltpu.CompilerParams(
            dimension_semantics=("parallel", "arbitrary"),
            vmem_limit_bytes=vmem_limit),
    )(par, x_t, *weight_arrays)

    zs = [x] + [zs_t[i * slot:i * slot + dim, :m].T for i in range(n_flows)]
    log_det = ld_t[0, :m]
    return zs, log_det
    # TODO(synk): NormalizingFlow.backward (inverse pass) is not implemented here.


# ----------------------------------------------------------------------------
# Pure-JAX reference (mirrors nflib AffineHalfFlow.forward) for validation.
# ----------------------------------------------------------------------------
def _reference_forward(x, flow_params, parities):
    m, _ = x.shape
    log_det = jnp.zeros((m,), jnp.float32)
    zs = [x]
    leaky = lambda h: jnp.where(h > 0, h, 0.2 * h)
    for p, parity in zip(flow_params, parities):
        x0, x1 = x[:, 0::2], x[:, 1::2]
        if parity:
            x0, x1 = x1, x0

        def mlp(h, pre):
            h = leaky(h @ p[pre + "_w1"] + p[pre + "_b1"])
            h = leaky(h @ p[pre + "_w2"] + p[pre + "_b2"])
            return h @ p[pre + "_w3"] + p[pre + "_b3"]

        s = mlp(x0, "s")
        t = mlp(x0, "t")
        z0, z1 = x0, jnp.exp(s) * x1 + t
        if parity:
            z0, z1 = z1, z0
        x = jnp.concatenate([z0, z1], axis=1)
        log_det = log_det + jnp.sum(s, axis=1)
        zs.append(x)
    return zs, log_det


# ----------------------------------------------------------------------------
# Deterministic parameter init (PyTorch nn.Linear default U(-1/sqrt(fan_in), .)).
# ----------------------------------------------------------------------------
def _init_linear(key, fan_in, fan_out):
    kw, kb = jax.random.split(key)
    bound = 1.0 / float(fan_in) ** 0.5
    w = jax.random.uniform(kw, (fan_in, fan_out), jnp.float32, -bound, bound)
    b = jax.random.uniform(kb, (1, fan_out), jnp.float32, -bound, bound)
    return w, b


def init_affine_half_flow(key, dim, nh):
    hd = dim // 2
    keys = jax.random.split(key, 6)
    p = {}
    p["s_w1"], p["s_b1"] = _init_linear(keys[0], hd, nh)
    p["s_w2"], p["s_b2"] = _init_linear(keys[1], nh, nh)
    p["s_w3"], p["s_b3"] = _init_linear(keys[2], nh, hd)
    p["t_w1"], p["t_b1"] = _init_linear(keys[3], hd, nh)
    p["t_w2"], p["t_b2"] = _init_linear(keys[4], nh, nh)
    p["t_w3"], p["t_b3"] = _init_linear(keys[5], nh, hd)
    return p


if __name__ == "__main__":
    m, dim, nh, n_flows = 8, 4, 32, 4

    key = jax.random.PRNGKey(0)
    key, xk = jax.random.split(key)
    x = jax.random.normal(xk, (m, dim), dtype=jnp.float32)

    flow_params, parities = [], []
    for i in range(n_flows):
        key, sub = jax.random.split(key)
        flow_params.append(init_affine_half_flow(sub, dim, nh))
        parities.append(i % 2)

    zs, log_det = normalizing_flow_forward(x, flow_params, parities)
    log_det = jax.block_until_ready(log_det)
    zs = [jax.block_until_ready(z) for z in zs]

    assert len(zs) == n_flows + 1
    assert zs[-1].shape == (m, dim)
    assert log_det.shape == (m,)

    # Validate against the straightforward JAX reference.  Pass-through /
    # affine coordinates are exact in the kernel now; residual differences come
    # only from default-precision MXU matmuls inside the s/t MLPs (present in
    # both paths).
    zs_ref, ld_ref = _reference_forward(x, flow_params, parities)
    for a, b in zip(zs, zs_ref):
        np.testing.assert_allclose(np.asarray(a), np.asarray(b),
                                   rtol=3e-2, atol=3e-2)
    np.testing.assert_allclose(np.asarray(log_det), np.asarray(ld_ref),
                               rtol=3e-2, atol=3e-2)

    print("KERNEL_OK")
</pallas_src>

<mosaic_0001>
module attributes {stable_mosaic.version = 11 : i64} {
  func.func @_fused_flow_kernel(%arg0: i32, %arg1: i32, %arg2: memref<4xi32, #tpu.memory_space<smem>>, %arg3: memref<4x128xf32, #tpu.memory_space<vmem>>, %arg4: memref<4x64x2xf32, #tpu.memory_space<vmem>>, %arg5: memref<4x64x1xf32, #tpu.memory_space<vmem>>, %arg6: memref<4x64x64xf32, #tpu.memory_space<vmem>>, %arg7: memref<4x64x1xf32, #tpu.memory_space<vmem>>, %arg8: memref<4x4x64xf32, #tpu.memory_space<vmem>>, %arg9: memref<4x4x1xf32, #tpu.memory_space<vmem>>, %arg10: memref<32x128xf32, #tpu.memory_space<vmem>>, %arg11: memref<1x128xf32, #tpu.memory_space<vmem>>, %arg12: memref<4x128xf32, #tpu.memory_space<vmem>>) attributes {dimension_semantics = [#tpu.dimension_semantics<parallel>, #tpu.dimension_semantics<arbitrary>], iteration_bounds = array<i64: 1, 4>, scalar_prefetch = 1 : i64, scratch_operands = 1 : i64, tpu.core_type = #tpu.core_type<tc>, window_params = [{transform_indices = @transform_0, window_bounds = array<i64: 4, 128>}, {pipeline_mode = #tpu.pipeline_mode<synchronous>, transform_indices = @transform_1, window_bounds = array<i64: 4, 64, 2>}, {pipeline_mode = #tpu.pipeline_mode<synchronous>, transform_indices = @transform_2, window_bounds = array<i64: 4, 64, 1>}, {pipeline_mode = #tpu.pipeline_mode<synchronous>, transform_indices = @transform_3, window_bounds = array<i64: 4, 64, 64>}, {pipeline_mode = #tpu.pipeline_mode<synchronous>, transform_indices = @transform_4, window_bounds = array<i64: 4, 64, 1>}, {pipeline_mode = #tpu.pipeline_mode<synchronous>, transform_indices = @transform_5, window_bounds = array<i64: 4, 4, 64>}, {pipeline_mode = #tpu.pipeline_mode<synchronous>, transform_indices = @transform_6, window_bounds = array<i64: 4, 4, 1>}, {transform_indices = @transform_7, window_bounds = array<i64: 32, 128>}, {transform_indices = @transform_8, window_bounds = array<i64: 1, 128>}]} {
    %c0_i32 = arith.constant 0 : i32
    %0 = arith.cmpi eq, %arg1, %c0_i32 : i32
    %1 = arith.extui %0 : i1 to i32
    %c0_i32_0 = arith.constant 0 : i32
    %2 = arith.cmpi ne, %1, %c0_i32_0 : i32
    scf.if %2 {
      %c0_36 = arith.constant 0 : index
      %c0_37 = arith.constant 0 : index
      %74 = vector.load %arg3[%c0_36, %c0_37] : memref<4x128xf32, #tpu.memory_space<vmem>>, vector<4x128xf32>
      %c0_38 = arith.constant 0 : index
      %c0_39 = arith.constant 0 : index
      %75 = vector.load %arg12[%c0_38, %c0_39] : memref<4x128xf32, #tpu.memory_space<vmem>>, vector<4x128xf32>
      tpu.vector_store %arg12[%c0_38, %c0_39], %74 {strides = array<i32>} : memref<4x128xf32, #tpu.memory_space<vmem>>, vector<4x128xf32>,
      %cst_40 = arith.constant 0.000000e+00 : f32
      %76 = vector.broadcast %cst_40 : f32 to vector<1x128xf32>
      %c0_41 = arith.constant 0 : index
      %c0_42 = arith.constant 0 : index
      %77 = vector.load %arg11[%c0_41, %c0_42] : memref<1x128xf32, #tpu.memory_space<vmem>>, vector<1x128xf32>
      tpu.vector_store %arg11[%c0_41, %c0_42], %76 {strides = array<i32>} : memref<1x128xf32, #tpu.memory_space<vmem>>, vector<1x128xf32>,
    } else {
    }
    %c0 = arith.constant 0 : index
    %c0_1 = arith.constant 0 : index
    %3 = vector.load %arg12[%c0, %c0_1] : memref<4x128xf32, #tpu.memory_space<vmem>>, vector<1x128xf32>
    %c2 = arith.constant 2 : index
    %c0_2 = arith.constant 0 : index
    %4 = vector.load %arg12[%c2, %c0_2] : memref<4x128xf32, #tpu.memory_space<vmem>>, vector<1x128xf32>
    %c1 = arith.constant 1 : index
    %c0_3 = arith.constant 0 : index
    %5 = vector.load %arg12[%c1, %c0_3] : memref<4x128xf32, #tpu.memory_space<vmem>>, vector<1x128xf32>
    %c3 = arith.constant 3 : index
    %c0_4 = arith.constant 0 : index
    %6 = vector.load %arg12[%c3, %c0_4] : memref<4x128xf32, #tpu.memory_space<vmem>>, vector<1x128xf32>
    %7 = tpu.concatenate %3, %4 in 0 : vector<1x128xf32>, vector<1x128xf32> -> vector<2x128xf32>
    %8 = tpu.concatenate %5, %6 in 0 : vector<1x128xf32>, vector<1x128xf32> -> vector<2x128xf32>
    %9 = arith.index_cast %arg1 : i32 to index
    %10 = memref.load %arg2[%9] : memref<4xi32, #tpu.memory_space<smem>>
    %c0_i32_5 = arith.constant 0 : i32
    %11 = arith.cmpi eq, %10, %c0_i32_5 : i32
    %12 = arith.select %11, %7, %8 : vector<2x128xf32>
    %c0_i32_6 = arith.constant 0 : i32
    %13 = arith.cmpi eq, %10, %c0_i32_6 : i32
    %14 = arith.select %13, %8, %7 : vector<2x128xf32>
    %15 = arith.index_cast %arg1 : i32 to index
    %c0_7 = arith.constant 0 : index
    %c0_8 = arith.constant 0 : index
    %16 = vector.load %arg4[%15, %c0_7, %c0_8] : memref<4x64x2xf32, #tpu.memory_space<vmem>>, vector<1x64x2xf32>
    %17 = vector.shape_cast %16 : vector<1x64x2xf32> to vector<64x2xf32>
    %cst = arith.constant dense<0.000000e+00> : vector<64x128xf32>
    %18 = tpu.matmul %17, %12, %cst {dimension_numbers = #tpu.dot_dimension_numbers<[1], [0], [0], [1], [0, 0, 1, 1], [], []>} : vector<64x2xf32>, vector<2x128xf32>, vector<64x128xf32> -> vector<64x128xf32>
    %19 = arith.index_cast %arg1 : i32 to index
    %c0_9 = arith.constant 0 : index
    %c0_10 = arith.constant 0 : index
    %20 = vector.load %arg5[%19, %c0_9, %c0_10] : memref<4x64x1xf32, #tpu.memory_space<vmem>>, vector<1x64x1xf32>
    %21 = vector.shape_cast %20 : vector<1x64x1xf32> to vector<64x1xf32>
    %22 = vector.broadcast %21 : vector<64x1xf32> to vector<64x128xf32>
    %23 = arith.addf %18, %22 : vector<64x128xf32>
    %cst_11 = arith.constant 0.000000e+00 : f32
    %24 = vector.broadcast %cst_11 : f32 to vector<64x128xf32>
    %25 = arith.cmpf ogt, %23, %24 : vector<64x128xf32>
    %cst_12 = arith.constant 2.000000e-01 : f32
    %26 = vector.broadcast %cst_12 : f32 to vector<64x128xf32>
    %27 = arith.mulf %26, %23 : vector<64x128xf32>
    %28 = arith.select %25, %23, %27 : vector<64x128xi1>, vector<64x128xf32>
    %29 = arith.index_cast %arg1 : i32 to index
    %c0_13 = arith.constant 0 : index
    %c0_14 = arith.constant 0 : index
    %30 = vector.load %arg6[%29, %c0_13, %c0_14] : memref<4x64x64xf32, #tpu.memory_space<vmem>>, vector<1x64x64xf32>
    %31 = vector.shape_cast %30 : vector<1x64x64xf32> to vector<64x64xf32>
    %cst_15 = arith.constant dense<0.000000e+00> : vector<64x128xf32>
    %32 = tpu.matmul %31, %28, %cst_15 {dimension_numbers = #tpu.dot_dimension_numbers<[1], [0], [0], [1], [0, 0, 1, 1], [], []>} : vector<64x64xf32>, vector<64x128xf32>, vector<64x128xf32> -> vector<64x128xf32>
    %33 = arith.index_cast %arg1 : i32 to index
    %c0_16 = arith.constant 0 : index
    %c0_17 = arith.constant 0 : index
    %34 = vector.load %arg7[%33, %c0_16, %c0_17] : memref<4x64x1xf32, #tpu.memory_space<vmem>>, vector<1x64x1xf32>
    %35 = vector.shape_cast %34 : vector<1x64x1xf32> to vector<64x1xf32>
    %36 = vector.broadcast %35 : vector<64x1xf32> to vector<64x128xf32>
    %37 = arith.addf %32, %36 : vector<64x128xf32>
    %cst_18 = arith.constant 0.000000e+00 : f32
    %38 = vector.broadcast %cst_18 : f32 to vector<64x128xf32>
    %39 = arith.cmpf ogt, %37, %38 : vector<64x128xf32>
    %cst_19 = arith.constant 2.000000e-01 : f32
    %40 = vector.broadcast %cst_19 : f32 to vector<64x128xf32>
    %41 = arith.mulf %40, %37 : vector<64x128xf32>
    %42 = arith.select %39, %37, %41 : vector<64x128xi1>, vector<64x128xf32>
    %43 = arith.index_cast %arg1 : i32 to index
    %c0_20 = arith.constant 0 : index
    %c0_21 = arith.constant 0 : index
    %44 = vector.load %arg8[%43, %c0_20, %c0_21] : memref<4x4x64xf32, #tpu.memory_space<vmem>>, vector<1x4x64xf32>
    %45 = vector.shape_cast %44 : vector<1x4x64xf32> to vector<4x64xf32>
    %cst_22 = arith.constant dense<0.000000e+00> : vector<4x128xf32>
    %46 = tpu.matmul %45, %42, %cst_22 {dimension_numbers = #tpu.dot_dimension_numbers<[1], [0], [0], [1], [0, 0, 1, 1], [], []>} : vector<4x64xf32>, vector<64x128xf32>, vector<4x128xf32> -> vector<4x128xf32>
    %47 = arith.index_cast %arg1 : i32 to index
    %c0_23 = arith.constant 0 : index
    %c0_24 = arith.constant 0 : index
    %48 = vector.load %arg9[%47, %c0_23, %c0_24] : memref<4x4x1xf32, #tpu.memory_space<vmem>>, vector<1x4x1xf32>
    %49 = vector.shape_cast %48 : vector<1x4x1xf32> to vector<4x1xf32>
    %50 = vector.broadcast %49 : vector<4x1xf32> to vector<4x128xf32>
    %51 = arith.addf %46, %50 : vector<4x128xf32>
    %52 = vector.extract_strided_slice %51 {offsets = [0, 0], sizes = [2, 128], strides = [1, 1]} : vector<4x128xf32> to vector<2x128xf32>
    %53 = vector.extract_strided_slice %51 {offsets = [2, 0], sizes = [2, 128], strides = [1, 1]} : vector<4x128xf32> to vector<2x128xf32>
    %54 = math.exp %52 : vector<2x128xf32>
    %55 = arith.mulf %54, %14 : vector<2x128xf32>
    %56 = arith.addf %55, %53 : vector<2x128xf32>
    %c0_i32_25 = arith.constant 0 : i32
    %57 = arith.cmpi eq, %10, %c0_i32_25 : i32
    %58 = arith.select %57, %12, %56 : vector<2x128xf32>
    %c0_i32_26 = arith.constant 0 : i32
    %59 = arith.cmpi eq, %10, %c0_i32_26 : i32
    %60 = arith.select %59, %56, %12 : vector<2x128xf32>
    %61 = tpu.concatenate %58, %60 in 0 : vector<2x128xf32>, vector<2x128xf32> -> vector<4x128xf32>
    %c0_27 = arith.constant 0 : index
    %c0_28 = arith.constant 0 : index
    %62 = vector.load %arg12[%c0_27, %c0_28] : memref<4x128xf32, #tpu.memory_space<vmem>>, vector<4x128xf32>
    tpu.vector_store %arg12[%c0_27, %c0_28], %61 {strides = array<i32>} : memref<4x128xf32, #tpu.memory_space<vmem>>, vector<4x128xf32>,
    %cst_29 = arith.constant 0.000000e+00 : f32
    %63 = vector.broadcast %cst_29 : f32 to vector<4x128xf32>
    %64 = tpu.concatenate %61, %63 in 0 : vector<4x128xf32>, vector<4x128xf32> -> vector<8x128xf32>
    %c8_i32 = arith.constant 8 : i32
    %65 = arith.muli %arg1, %c8_i32 : i32
    %66 = tpu.assume_multiple %65, 8 : i32
    %67 = arith.index_cast %66 : i32 to index
    %c0_30 = arith.constant 0 : index
    %68 = vector.load %arg10[%67, %c0_30] : memref<32x128xf32, #tpu.memory_space<vmem>>, vector<8x128xf32>
    tpu.vector_store %arg10[%67, %c0_30], %64 {strides = array<i32>} : memref<32x128xf32, #tpu.memory_space<vmem>>, vector<8x128xf32>,
    %c0_31 = arith.constant 0 : index
    %c0_32 = arith.constant 0 : index
    %69 = vector.load %arg11[%c0_31, %c0_32] : memref<1x128xf32, #tpu.memory_space<vmem>>, vector<1x128xf32>
    %cst_33 = arith.constant dense<0.000000e+00> : vector<128xf32>
    %70 = vector.multi_reduction <add>, %52, %cst_33 [0] : vector<2x128xf32> to vector<128xf32>
    %71 = vector.shape_cast %70 : vector<128xf32> to vector<1x128xf32>
    %72 = arith.addf %69, %71 : vector<1x128xf32>
    %c0_34 = arith.constant 0 : index
    %c0_35 = arith.constant 0 : index
    %73 = vector.load %arg11[%c0_34, %c0_35] : memref<1x128xf32, #tpu.memory_space<vmem>>, vector<1x128xf32>
    tpu.vector_store %arg11[%c0_34, %c0_35], %72 {strides = array<i32>} : memref<1x128xf32, #tpu.memory_space<vmem>>, vector<1x128xf32>,
    return
  }
  func.func @transform_0(%arg0: i32, %arg1: i32, %arg2: memref<4xi32, #tpu.memory_space<smem>>) -> (i32, i32) {
    %c0_i32 = arith.constant 0 : i32
    %c0_i32_0 = arith.constant 0 : i32
    return %c0_i32, %arg0 : i32, i32
  }
  func.func @transform_1(%arg0: i32, %arg1: i32, %arg2: memref<4xi32, #tpu.memory_space<smem>>) -> (i32, i32, i32) {
    %c0_i32 = arith.constant 0 : i32
    %c0_i32_0 = arith.constant 0 : i32
    %c0_i32_1 = arith.constant 0 : i32
    %c0_i32_2 = arith.constant 0 : i32
    return %c0_i32, %c0_i32_0, %c0_i32_1 : i32, i32, i32
  }
  func.func @transform_2(%arg0: i32, %arg1: i32, %arg2: memref<4xi32, #tpu.memory_space<smem>>) -> (i32, i32, i32) {
    %c0_i32 = arith.constant 0 : i32
    %c0_i32_0 = arith.constant 0 : i32
    %c0_i32_1 = arith.constant 0 : i32
    %c0_i32_2 = arith.constant 0 : i32
    return %c0_i32, %c0_i32_0, %c0_i32_1 : i32, i32, i32
  }
  func.func @transform_3(%arg0: i32, %arg1: i32, %arg2: memref<4xi32, #tpu.memory_space<smem>>) -> (i32, i32, i32) {
    %c0_i32 = arith.constant 0 : i32
    %c0_i32_0 = arith.constant 0 : i32
    %c0_i32_1 = arith.constant 0 : i32
    %c0_i32_2 = arith.constant 0 : i32
    return %c0_i32, %c0_i32_0, %c0_i32_1 : i32, i32, i32
  }
  func.func @transform_4(%arg0: i32, %arg1: i32, %arg2: memref<4xi32, #tpu.memory_space<smem>>) -> (i32, i32, i32) {
    %c0_i32 = arith.constant 0 : i32
    %c0_i32_0 = arith.constant 0 : i32
    %c0_i32_1 = arith.constant 0 : i32
    %c0_i32_2 = arith.constant 0 : i32
    return %c0_i32, %c0_i32_0, %c0_i32_1 : i32, i32, i32
  }
  func.func @transform_5(%arg0: i32, %arg1: i32, %arg2: memref<4xi32, #tpu.memory_space<smem>>) -> (i32, i32, i32) {
    %c0_i32 = arith.constant 0 : i32
    %c0_i32_0 = arith.constant 0 : i32
    %c0_i32_1 = arith.constant 0 : i32
    %c0_i32_2 = arith.constant 0 : i32
    return %c0_i32, %c0_i32_0, %c0_i32_1 : i32, i32, i32
  }
  func.func @transform_6(%arg0: i32, %arg1: i32, %arg2: memref<4xi32, #tpu.memory_space<smem>>) -> (i32, i32, i32) {
    %c0_i32 = arith.constant 0 : i32
    %c0_i32_0 = arith.constant 0 : i32
    %c0_i32_1 = arith.constant 0 : i32
    %c0_i32_2 = arith.constant 0 : i32
    return %c0_i32, %c0_i32_0, %c0_i32_1 : i32, i32, i32
  }
  func.func @transform_7(%arg0: i32, %arg1: i32, %arg2: memref<4xi32, #tpu.memory_space<smem>>) -> (i32, i32) {
    %c0_i32 = arith.constant 0 : i32
    %c0_i32_0 = arith.constant 0 : i32
    return %c0_i32, %arg0 : i32, i32
  }
  func.func @transform_8(%arg0: i32, %arg1: i32, %arg2: memref<4xi32, #tpu.memory_space<smem>>) -> (i32, i32) {
    %c0_i32 = arith.constant 0 : i32
    %c0_i32_0 = arith.constant 0 : i32
    return %c0_i32, %arg0 : i32, i32
  }
}

</mosaic_0001>

<llo_original>
// kernel: tpu_custom_call.1
$region0: #{tpu_custom_call.1}
  #allocation0 [shape = 'u32[]', space=smem, size = 0x4, offset = 0x4, fixed_abs, tag = 'smem constant byte address 0x4 - core index']
  #allocation1 [shape = 'u32[144,128]{1,0:T(1,128)}', space=vmem, size = 0x12000, scoped, tag = 'internal scratch']
  #allocation2 [shape = 'f32[4,128]{1,0:T(4,128)}', space=vmem, size = 0x800, scoped, tag = 'scratch operand']
  #allocation3 [shape = 's32[1]{0}', space=sflag, size = 0x4, scoped, tag = 'scoped memory for tpu_custom_call.1']
  #allocation4 [shape = 'u8[512]{0}', space=smem, size = 0x200, scoped, tag = 'prefetched SMEM operand 0']
  %s0 = inlined_call_operand.vmem [shape: s32[4], index: 0, kind: input, shape index: {}]
  %s1 = inlined_call_operand.vmem [shape: f32[4,128], index: 1, kind: input, shape index: {}]
  %s2 = inlined_call_operand.vmem [shape: f32[4,64,2], index: 2, kind: input, shape index: {}]
  %s3 = inlined_call_operand.vmem [shape: f32[4,64,1], index: 3, kind: input, shape index: {}]
  %s4 = inlined_call_operand.vmem [shape: f32[4,64,64], index: 4, kind: input, shape index: {}]
  %s5 = inlined_call_operand.vmem [shape: f32[4,64,1], index: 5, kind: input, shape index: {}]
  %s6 = inlined_call_operand.vmem [shape: f32[4,4,64], index: 6, kind: input, shape index: {}]
  %s7 = inlined_call_operand.vmem [shape: f32[4,4,1], index: 7, kind: input, shape index: {}]
  %s8 = inlined_call_operand.hbm [shape: f32[32,128], index: 8, kind: output, shape index: {0}]
  %s9 = inlined_call_operand.hbm [shape: f32[1,128], index: 9, kind: output, shape index: {1}]
  %10 = xla_tuple %s8, %s9
  %s11 = sld [smem:[#allocation0]]
  $region73: #{tpu_custom_call.1} parent=0
    _
  %s13 = ssub.s32 1, %s11
  %s14 = scalar_select 0, %s13, %s11
  %s15 = sshll.u32 %s0, 4
  %s16 = int_to_ptr.vmem [resolvable:$true] %s15
  %18 = dma.vmem_to_smem %s16, 16, [#allocation4], [#allocation3]
  %19 = dma.done [#allocation3], 16
  %20 = sfence
  $region1: #{tpu_custom_call.1} parent=0
    #allocation5 [shape = 'u8[16384]{0}', space=vmem, size = 0x4000, scoped, tag = 'output window, operand 0, single buffered']
    #allocation6 [shape = 's32[2]{0}', space=sflag, size = 0x8, scoped, tag = 'scoped memory for tpu_custom_call.1']
    #allocation7 [shape = 'u8[512]{0}', space=vmem, size = 0x400, scoped, tag = 'output window, operand 1, single buffered']
    #allocation8 [shape = 's32[1]{0}', space=sflag, size = 0x4, scoped, tag = 'scoped memory for tpu_custom_call.1']
    %21 = vsyncpa [#allocation6], 0
    %22 = vsyncpa [#allocation8], 0
    loop: start=0, step=1, limit=6
    $region2: #{tpu_custom_call.1} parent=1 // loop_pre_header
      _
    $region3: #{tpu_custom_call.1} parent=1 // loop_header
      %s24 = sphi 0, %s28
      %p25 = scmp.ge.s32.totalorder %s24, 6
      %s31 = sphi 0, %s43
      %s32 = sphi 0, %s39
      %s33 = sphi 0, %s31
      %s34 = sphi 0, %s32
      %s35 = sphi 0, %s33
      %s36 = sphi 0, %s34
      %s46 = sphi 0, %s48
      %s49 = sphi 0, %s46
      %s50 = sphi 0, %s49
      %s66 = sphi 0, %s50
      %s70 = sphi 0, %s70
      %s72 = sphi 0, %s70
      %s73 = sphi 0, %s72
      %s87 = sphi 0, %s73
      %s91 = sphi 0, %s91
      %s93 = sphi 0, %s91
      %s94 = sphi 0, %s93
      %s108 = sphi 0, %s94
      %s112 = sphi 0, %s112
      %s114 = sphi 0, %s112
      %s115 = sphi 0, %s114
      %s129 = sphi 0, %s115
      %s133 = sphi 0, %s133
      %s135 = sphi 0, %s133
      %s136 = sphi 0, %s135
      %s150 = sphi 0, %s136
      %s154 = sphi 0, %s154
      %s156 = sphi 0, %s154
      %s157 = sphi 0, %s156
      %s171 = sphi 0, %s157
      %s175 = sphi 0, %s175
      %s177 = sphi 0, %s175
      %s178 = sphi 0, %s177
      %s192 = sphi 0, %s178
      %s198 = sphi 0, %s200
      %s201 = sphi 0, %s198
      %s202 = sphi 0, %s201
      %s218 = sphi 0, %s202
      %s224 = sphi 0, %s226
      %s227 = sphi 0, %s224
      %s228 = sphi 0, %s227
      %s244 = sphi 0, %s228
    $region4: #{tpu_custom_call.1} parent=1 // loop_header_branch
      %27 = sbr.rel (%p25) target = $region8
    $region5: #{tpu_custom_call.1} parent=1 // loop_body
      %s29 = ssub.s32 %s24, 1
      %s30 = ssub.s32 %s24, 2
      %s37 = sadd.s32 1, %s32
      %p38 = scmp.ge.s32.totalorder %s37, 4
      %s39 = scalar_select %p38, 0, %s37
      %s40 = sadd.s32 1, %s31
      %s41 = scalar_select %p38, %s40, %s31
      %p42 = scmp.ge.s32.totalorder %s41, 1
      %s43 = scalar_select %p42, 0, %s41
      %s44 = ssub.s32 %s31, %s43
      %p45 = scmp.eq.s32.totalorder %s44, 0
      %s47 = sadd.s32 %s46, 1
      %s48 = scalar_select %p45, %s46, %s47
      %p51 = pneg %p45
      %p52 = scmp.eq.s32.totalorder %s24, 3
      %p53 = por %p51, %p52
      %p54 = scmp.ne.s32.totalorder %s46, %s49
      %p55 = scmp.eq.s32.totalorder %s24, 0
      %p56 = por %p54, %p55
      %p57 = scmp.ne.s32.totalorder %s46, %s49
      %p58 = scmp.eq.s32.totalorder %s29, 3
      %p59 = por %p57, %p58
      %p60 = scmp.ne.s32.totalorder %s49, %s50
      %p61 = scmp.eq.s32.totalorder %s29, 0
      %p62 = por %p60, %p61
      %p63 = scmp.ne.s32.totalorder %s49, %s50
      %p64 = scmp.eq.s32.totalorder %s30, 3
      %p65 = por %p63, %p64
      %p67 = scmp.ne.s32.totalorder %s50, %s66
      %p68 = scmp.eq.s32.totalorder %s30, 0
      %p69 = por %p67, %p68
      %s71 = sadd.s32 %s70, 1
      %p74 = scmp.eq.s32.totalorder %s24, 3
      %p75 = scmp.ne.s32.totalorder %s70, %s72
      %p76 = scmp.eq.s32.totalorder %s24, 0
      %p77 = por %p75, %p76
      %p78 = scmp.ne.s32.totalorder %s70, %s72
      %p79 = scmp.eq.s32.totalorder %s29, 3
      %p80 = por %p78, %p79
      %p81 = scmp.ne.s32.totalorder %s72, %s73
      %p82 = scmp.eq.s32.totalorder %s29, 0
      %p83 = por %p81, %p82
      %p84 = scmp.ne.s32.totalorder %s72, %s73
      %p85 = scmp.eq.s32.totalorder %s30, 3
      %p86 = por %p84, %p85
      %p88 = scmp.ne.s32.totalorder %s73, %s87
      %p89 = scmp.eq.s32.totalorder %s30, 0
      %p90 = por %p88, %p89
      %s92 = sadd.s32 %s91, 1
      %p95 = scmp.eq.s32.totalorder %s24, 3
      %p96 = scmp.ne.s32.totalorder %s91, %s93
      %p97 = scmp.eq.s32.totalorder %s24, 0
      %p98 = por %p96, %p97
      %p99 = scmp.ne.s32.totalorder %s91, %s93
      %p100 = scmp.eq.s32.totalorder %s29, 3
      %p101 = por %p99, %p100
      %p102 = scmp.ne.s32.totalorder %s93, %s94
      %p103 = scmp.eq.s32.totalorder %s29, 0
      %p104 = por %p102, %p103
      %p105 = scmp.ne.s32.totalorder %s93, %s94
      %p106 = scmp.eq.s32.totalorder %s30, 3
      %p107 = por %p105, %p106
      %p109 = scmp.ne.s32.totalorder %s94, %s108
      %p110 = scmp.eq.s32.totalorder %s30, 0
      %p111 = por %p109, %p110
      %s113 = sadd.s32 %s112, 1
      %p116 = scmp.eq.s32.totalorder %s24, 3
      %p117 = scmp.ne.s32.totalorder %s112, %s114
      %p118 = scmp.eq.s32.totalorder %s24, 0
      %p119 = por %p117, %p118
      %p120 = scmp.ne.s32.totalorder %s112, %s114
      %p121 = scmp.eq.s32.totalorder %s29, 3
      %p122 = por %p120, %p121
      %p123 = scmp.ne.s32.totalorder %s114, %s115
      %p124 = scmp.eq.s32.totalorder %s29, 0
      %p125 = por %p123, %p124
      %p126 = scmp.ne.s32.totalorder %s114, %s115
      %p127 = scmp.eq.s32.totalorder %s30, 3
      %p128 = por %p126, %p127
      %p130 = scmp.ne.s32.totalorder %s115, %s129
      %p131 = scmp.eq.s32.totalorder %s30, 0
      %p132 = por %p130, %p131
      %s134 = sadd.s32 %s133, 1
      %p137 = scmp.eq.s32.totalorder %s24, 3
      %p138 = scmp.ne.s32.totalorder %s133, %s135
      %p139 = scmp.eq.s32.totalorder %s24, 0
      %p140 = por %p138, %p139
      %p141 = scmp.ne.s32.totalorder %s133, %s135
      %p142 = scmp.eq.s32.totalorder %s29, 3
      %p143 = por %p141, %p142
      %p144 = scmp.ne.s32.totalorder %s135, %s136
      %p145 = scmp.eq.s32.totalorder %s29, 0
      %p146 = por %p144, %p145
      %p147 = scmp.ne.s32.totalorder %s135, %s136
      %p148 = scmp.eq.s32.totalorder %s30, 3
      %p149 = por %p147, %p148
      %p151 = scmp.ne.s32.totalorder %s136, %s150
      %p152 = scmp.eq.s32.totalorder %s30, 0
      %p153 = por %p151, %p152
      %s155 = sadd.s32 %s154, 1
      %p158 = scmp.eq.s32.totalorder %s24, 3
      %p159 = scmp.ne.s32.totalorder %s154, %s156
      %p160 = scmp.eq.s32.totalorder %s24, 0
      %p161 = por %p159, %p160
      %p162 = scmp.ne.s32.totalorder %s154, %s156
      %p163 = scmp.eq.s32.totalorder %s29, 3
      %p164 = por %p162, %p163
      %p165 = scmp.ne.s32.totalorder %s156, %s157
      %p166 = scmp.eq.s32.totalorder %s29, 0
      %p167 = por %p165, %p166
      %p168 = scmp.ne.s32.totalorder %s156, %s157
      %p169 = scmp.eq.s32.totalorder %s30, 3
      %p170 = por %p168, %p169
      %p172 = scmp.ne.s32.totalorder %s157, %s171
      %p173 = scmp.eq.s32.totalorder %s30, 0
      %p174 = por %p172, %p173
      %s176 = sadd.s32 %s175, 1
      %p179 = scmp.eq.s32.totalorder %s24, 3
      %p180 = scmp.ne.s32.totalorder %s175, %s177
      %p181 = scmp.eq.s32.totalorder %s24, 0
      %p182 = por %p180, %p181
      %p183 = scmp.ne.s32.totalorder %s175, %s177
      %p184 = scmp.eq.s32.totalorder %s29, 3
      %p185 = por %p183, %p184
      %p186 = scmp.ne.s32.totalorder %s177, %s178
      %p187 = scmp.eq.s32.totalorder %s29, 0
      %p188 = por %p186, %p187
      %p189 = scmp.ne.s32.totalorder %s177, %s178
      %p190 = scmp.eq.s32.totalorder %s30, 3
      %p191 = por %p189, %p190
      %p193 = scmp.ne.s32.totalorder %s178, %s192
      %p194 = scmp.eq.s32.totalorder %s30, 0
      %p195 = por %p193, %p194
      %s196 = ssub.s32 %s31, %s43
      %p197 = scmp.eq.s32.totalorder %s196, 0
      %s199 = sadd.s32 %s198, 1
      %s200 = scalar_select %p197, %s198, %s199
      %p203 = pneg %p197
      %p204 = scmp.eq.s32.totalorder %s24, 3
      %p205 = por %p203, %p204
      %p206 = scmp.ne.s32.totalorder %s198, %s201
      %p207 = scmp.eq.s32.totalorder %s24, 0
      %p208 = por %p206, %p207
      %p209 = scmp.ne.s32.totalorder %s198, %s201
      %p210 = scmp.eq.s32.totalorder %s29, 3
      %p211 = por %p209, %p210
      %p212 = scmp.ne.s32.totalorder %s201, %s202
      %p213 = scmp.eq.s32.totalorder %s29, 0
      %p214 = por %p212, %p213
      %p215 = scmp.ne.s32.totalorder %s201, %s202
      %p216 = scmp.eq.s32.totalorder %s30, 3
      %p217 = por %p215, %p216
      %p219 = scmp.ne.s32.totalorder %s202, %s218
      %p220 = scmp.eq.s32.totalorder %s30, 0
      %p221 = por %p219, %p220
      %s222 = ssub.s32 %s31, %s43
      %p223 = scmp.eq.s32.totalorder %s222, 0
      %s225 = sadd.s32 %s224, 1
      %s226 = scalar_select %p223, %s224, %s225
      %p229 = pneg %p223
      %p230 = scmp.eq.s32.totalorder %s24, 3
      %p231 = por %p229, %p230
      %p232 = scmp.ne.s32.totalorder %s224, %s227
      %p233 = scmp.eq.s32.totalorder %s24, 0
      %p234 = por %p232, %p233
      %p235 = scmp.ne.s32.totalorder %s224, %s227
      %p236 = scmp.eq.s32.totalorder %s29, 3
      %p237 = por %p235, %p236
      %p238 = scmp.ne.s32.totalorder %s227, %s228
      %p239 = scmp.eq.s32.totalorder %s29, 0
      %p240 = por %p238, %p239
      %p241 = scmp.ne.s32.totalorder %s227, %s228
      %p242 = scmp.eq.s32.totalorder %s30, 3
      %p243 = por %p241, %p242
      %p245 = scmp.ne.s32.totalorder %s228, %s244
      %p246 = scmp.eq.s32.totalorder %s30, 0
      %p247 = por %p245, %p246
      %p248 = scmp.le.s32.totalorder 1, %s24
      %p249 = scmp.lt.s32.totalorder %s24, 5
      %p250 = pnand %p248, %p249
      %p251 = pneg %p250
      // Predicated region
      $region9: #{tpu_custom_call.1} parent=5 // pred_check
        _
      $region10: #{tpu_custom_call.1} parent=5 // pred_check_branch
        %253 = sbr.rel (%p250) target = $region12
      $region11: #{tpu_custom_call.1} parent=5 // pred_region
        %s254 = ssub.s32 %s24, 1
        // Predicated region
        $region13: #{tpu_custom_call.1} parent=11 // pred_check
          %p255 = pneg %p62
        $region14: #{tpu_custom_call.1} parent=11 // pred_check_branch
          %257 = sbr.rel (%p255) target = $region16
        $region15: #{tpu_custom_call.1} parent=11 // pred_region
          %p258 = scmp.lt.s32.totalorder %s33, 0
          %s259 = scalar_select %p258, %s33, 0
          %s260 = smul.addr %s259, 4
          %s261 = scalar_lea.vmem %s1, %s260
        $region16: #{tpu_custom_call.1} parent=11 // pred_fallthru
          _
        // Predicated region
        $region17: #{tpu_custom_call.1} parent=11 // pred_check
          %p262 = pneg %p83
        $region18: #{tpu_custom_call.1} parent=11 // pred_check_branch
          %264 = sbr.rel (%p262) target = $region20
        $region19: #{tpu_custom_call.1} parent=11 // pred_region
          _
        $region20: #{tpu_custom_call.1} parent=11 // pred_fallthru
          _
        // Predicated region
        $region21: #{tpu_custom_call.1} parent=11 // pred_check
          %p265 = pneg %p104
        $region22: #{tpu_custom_call.1} parent=11 // pred_check_branch
          %267 = sbr.rel (%p265) target = $region24
        $region23: #{tpu_custom_call.1} parent=11 // pred_region
          _
        $region24: #{tpu_custom_call.1} parent=11 // pred_fallthru
          _
        // Predicated region
        $region25: #{tpu_custom_call.1} parent=11 // pred_check
          %p268 = pneg %p125
        $region26: #{tpu_custom_call.1} parent=11 // pred_check_branch
          %270 = sbr.rel (%p268) target = $region28
        $region27: #{tpu_custom_call.1} parent=11 // pred_region
          _
        $region28: #{tpu_custom_call.1} parent=11 // pred_fallthru
          _
        // Predicated region
        $region29: #{tpu_custom_call.1} parent=11 // pred_check
          %p271 = pneg %p146
        $region30: #{tpu_custom_call.1} parent=11 // pred_check_branch
          %273 = sbr.rel (%p271) target = $region32
        $region31: #{tpu_custom_call.1} parent=11 // pred_region
          _
        $region32: #{tpu_custom_call.1} parent=11 // pred_fallthru
          _
        // Predicated region
        $region33: #{tpu_custom_call.1} parent=11 // pred_check
          %p274 = pneg %p167
        $region34: #{tpu_custom_call.1} parent=11 // pred_check_branch
          %276 = sbr.rel (%p274) target = $region36
        $region35: #{tpu_custom_call.1} parent=11 // pred_region
          _
        $region36: #{tpu_custom_call.1} parent=11 // pred_fallthru
          _
        // Predicated region
        $region37: #{tpu_custom_call.1} parent=11 // pred_check
          %p277 = pneg %p188
        $region38: #{tpu_custom_call.1} parent=11 // pred_check_branch
          %279 = sbr.rel (%p277) target = $region40
        $region39: #{tpu_custom_call.1} parent=11 // pred_region
          _
        $region40: #{tpu_custom_call.1} parent=11 // pred_fallthru
          _
      $region12: #{tpu_custom_call.1} parent=5 // pred_fallthru
        _
      %p280 = scmp.lt.s32.totalorder %s24, 4
      // Predicated region
      $region41: #{tpu_custom_call.1} parent=5 // pred_check
        %p281 = pneg %p280
      $region42: #{tpu_custom_call.1} parent=5 // pred_check_branch
        %283 = sbr.rel (%p281) target = $region44
      $region43: #{tpu_custom_call.1} parent=5 // pred_region
        _
      $region44: #{tpu_custom_call.1} parent=5 // pred_fallthru
        _
      %p284 = scmp.le.s32.totalorder 1, %s24
      %p285 = scmp.lt.s32.totalorder %s24, 5
      %p286 = pnand %p284, %p285
      %p287 = pneg %p286
      // Predicated region
      $region45: #{tpu_custom_call.1} parent=5 // pred_check
        _
      $region46: #{tpu_custom_call.1} parent=5 // pred_check_branch
        %289 = sbr.rel (%p286) target = $region48
      $region47: #{tpu_custom_call.1} parent=5 // pred_region
        %s290 = ssub.s32 %s24, 1
        %p291 = scmp.lt.s32.totalorder %s33, 0
        %s292 = scalar_select %p291, %s33, 0
        %s293 = smul.addr %s292, 4
        %s294 = scalar_lea.vmem %s1, %s293
        %p295 = pneg %p62
        %p296 = pneg %p59
        %p297 = pneg %p83
        %p298 = pneg %p80
        %p299 = pneg %p104
        %p300 = pneg %p101
        %p301 = pneg %p125
        %p302 = pneg %p122
        %p303 = pneg %p146
        %p304 = pneg %p143
        %p305 = pneg %p167
        %p306 = pneg %p164
        %p307 = pneg %p188
        %p308 = pneg %p185
        %p309 = pneg %p214
        %p310 = pneg %p211
        %p311 = pneg %p240
        %p312 = pneg %p237
        %p313 = scmp.lt.s32.totalorder %s33, 0
        %s314 = scalar_select %p313, %s33, 0
        %s315 = smul.addr %s314, 4
        %s316 = scalar_lea.vmem %s1, %s315
        %p317 = scmp.eq.s32.totalorder %s34, 0
        // Predicated region
        $region49: #{tpu_custom_call.1} parent=47 // pred_check
          %p318 = pneg %p317
        $region50: #{tpu_custom_call.1} parent=47 // pred_check_branch
          %320 = sbr.rel (%p318) target = $region52
        $region51: #{tpu_custom_call.1} parent=47 // pred_region
          %v321 = vld [vmem:[%s316] sm:$0xf]
          %322 = vst [vmem:[#allocation2] sm:$0xf] %v321
          %323 = vst [vmem:[#allocation7] sm:$0x1] 0.0
        $region52: #{tpu_custom_call.1} parent=47 // pred_fallthru
          _
        %v324 = vld [vmem:[#allocation2] sm:$0x1]
        %v325 = vld [vmem:[#allocation2 + $0x2] sm:$0x1]
        %v326 = vld [vmem:[#allocation2 + $0x1] sm:$0x1]
        %v327 = vld [vmem:[#allocation2 + $0x3] sm:$0x1]
        %v329 = vrot.slane %v325, 7
        %vm331 = vcmask 1040384
        %v332 = vsel %vm331, %v324, %v329
        %v334 = vrot.slane %v327, 7
        %v336 = vsel %vm331, %v326, %v334
        %s337 = sld [smem:[#allocation4 + %s34]]
        %p338 = scmp.eq.s32.totalorder %s337, 0
        %s339 = scalar_select %p338, 1, 0
        %v340 = vstv %s339
        %vm341 = vcmp.eq.s32.totalorder %v340, 1
        %v342 = vsel %vm341, %v332, %v336
        %v343 = vsel %vm341, %v336, %v332
        %s344 = smul.u32 %s34, 64
        %s345 = scalar_lea.vmem %s2, %s344
        %v346 = vld [vmem:[%s345] sm:$0xff]
        %v347 = vld [vmem:[%s345 + $0x8] sm:$0xff]
        %v348 = vld [vmem:[%s345 + $0x10] sm:$0xff]
        %v349 = vld [vmem:[%s345 + $0x18] sm:$0xff]
        %v350 = vld [vmem:[%s345 + $0x20] sm:$0xff]
        %v351 = vld [vmem:[%s345 + $0x28] sm:$0xff]
        %v352 = vld [vmem:[%s345 + $0x30] sm:$0xff]
        %v353 = vld [vmem:[%s345 + $0x38] sm:$0xff]
        %s354 = scalar_lea.vmem %s3, %s344
        %v355 = vld [vmem:[%s354] sm:$0xff]
        %v356 = vld [vmem:[%s354 + $0x8] sm:$0xff]
        %v357 = vld [vmem:[%s354 + $0x10] sm:$0xff]
        %v358 = vld [vmem:[%s354 + $0x18] sm:$0xff]
        %v359 = vld [vmem:[%s354 + $0x20] sm:$0xff]
        %v360 = vld [vmem:[%s354 + $0x28] sm:$0xff]
        %v361 = vld [vmem:[%s354 + $0x30] sm:$0xff]
        %v362 = vld [vmem:[%s354 + $0x38] sm:$0xff]
        %364 = vset.pattern.permute.xlu0 0
        %365 = vperm.xlu0 %364, %v355
        %v366 = vpop.permute.xlu0 %365
        %369 = vset.pattern.permute.xlu0 0
        %370 = vperm.xlu0 %369, %v356
        %v371 = vpop.permute.xlu0 %370
        %374 = vset.pattern.permute.xlu0 0
        %375 = vperm.xlu0 %374, %v357
        %v376 = vpop.permute.xlu0 %375
        %379 = vset.pattern.permute.xlu0 0
        %380 = vperm.xlu0 %379, %v358
        %v381 = vpop.permute.xlu0 %380
        %384 = vset.pattern.permute.xlu0 0
        %385 = vperm.xlu0 %384, %v359
        %v386 = vpop.permute.xlu0 %385
        %389 = vset.pattern.permute.xlu0 0
        %390 = vperm.xlu0 %389, %v360
        %v391 = vpop.permute.xlu0 %390
        %394 = vset.pattern.permute.xlu0 0
        %395 = vperm.xlu0 %394, %v361
        %v396 = vpop.permute.xlu0 %395
        %399 = vset.pattern.permute.xlu0 0
        %400 = vperm.xlu0 %399, %v362
        %v401 = vpop.permute.xlu0 %400
        %vm403 = vcmask 15360
        %v405 = vsel %vm403, %v346, 0
        %v408 = vsel %vm403, %v347, 0
        %v411 = vsel %vm403, %v348, 0
        %v414 = vsel %vm403, %v349, 0
        %v417 = vsel %vm403, %v350, 0
        %v420 = vsel %vm403, %v351, 0
        %v423 = vsel %vm403, %v352, 0
        %v426 = vsel %vm403, %v353, 0
        %vm428 = vcmask 1041408
        %v430 = vsel %vm428, %v342, 0
        %432 = vmatprep.subr.mxu0 0.0
        %433 = vmatpush1.msra.mxu0 %v430
        %434 = vmatprep.subr.mxu0 0.0
        %435 = vmatpush1.msra.mxu0 0.0
        %436 = vmatprep.subr.mxu0 0.0
        %437 = vmatpush1.msra.mxu0 0.0
        %438 = vmatprep.subr.mxu0 0.0
        %439 = vmatpush1.msra.mxu0 0.0
        %440 = vmatprep.subr.mxu0 0.0
        %441 = vmatpush1.msra.mxu0 0.0
        %442 = vmatprep.subr.mxu0 0.0
        %443 = vmatpush1.msra.mxu0 0.0
        %444 = vmatprep.subr.mxu0 0.0
        %445 = vmatpush1.msra.mxu0 0.0
        %446 = vmatprep.subr.mxu0 0.0
        %447 = vmatpush1.msra.mxu0 0.0
        %448 = vmatprep.subr.mxu0 0.0
        %449 = vmatpush1.msra.mxu0 0.0
        %450 = vmatprep.subr.mxu0 0.0
        %451 = vmatpush1.msra.mxu0 0.0
        %452 = vmatprep.subr.mxu0 0.0
        %453 = vmatpush1.msra.mxu0 0.0
        %454 = vmatprep.subr.mxu0 0.0
        %455 = vmatpush1.msra.mxu0 0.0
        %456 = vmatprep.subr.mxu0 0.0
        %457 = vmatpush1.msra.mxu0 0.0
        %458 = vmatprep.subr.mxu0 0.0
        %459 = vmatpush1.msra.mxu0 0.0
        %460 = vmatprep.subr.mxu0 0.0
        %461 = vmatpush1.msra.mxu0 0.0
        %462 = vmatprep.subr.mxu0 0.0
        %463 = vmatpush1.msra.mxu0 0.0
        %464 = vmatprep.subr.mxu0 0.0
        %465 = vmatpush1.msra.mxu0 0.0
        %466 = vmatprep.subr.mxu0 0.0
        %467 = vmatpush1.msra.mxu0 0.0
        %468 = vmatprep.subr.mxu0 0.0
        %469 = vmatpush1.msra.mxu0 0.0
        %470 = vmatprep.subr.mxu0 0.0
        %471 = vmatpush1.msra.mxu0 0.0
        %472 = vmatprep.subr.mxu0 0.0
        %473 = vmatpush1.msra.mxu0 0.0
        %474 = vmatprep.subr.mxu0 0.0
        %475 = vmatpush1.msra.mxu0 0.0
        %476 = vmatprep.subr.mxu0 0.0
        %477 = vmatpush1.msra.mxu0 0.0
        %478 = vmatprep.subr.mxu0 0.0
        %479 = vmatpush1.msra.mxu0 0.0
        %480 = vmatprep.subr.mxu0 0.0
        %481 = vmatpush1.msra.mxu0 0.0
        %482 = vmatprep.subr.mxu0 0.0
        %483 = vmatpush1.msra.mxu0 0.0
        %484 = vmatprep.subr.mxu0 0.0
        %485 = vmatpush1.msra.mxu0 0.0
        %486 = vmatprep.subr.mxu0 0.0
        %487 = vmatpush1.msra.mxu0 0.0
        %488 = vmatprep.subr.mxu0 0.0
        %489 = vmatpush1.msra.mxu0 0.0
        %490 = vmatprep.subr.mxu0 0.0
        %491 = vmatpush1.msra.mxu0 0.0
        %492 = vmatprep.subr.mxu0 0.0
        %493 = vmatpush1.msra.mxu0 0.0
        %494 = vmatprep.subr.mxu0 0.0
        %495 = vmatpush1.msra.mxu0 0.0
        %496 = vmatprep.mubr.f32.mxu0 0.0
        %497 = vmatmul.mubr.f32.gmra.mrb[0].mxu0 %v405
        %v498 = vpop.f32.mrb[0].mxu0
        %v499 = vadd.f32 %v366, %v498
        %v500 = vpop.f32.mrb[0].mxu0
        %501 = vmatprep.mubr.f32.mxu0 0.0
        %502 = vmatmul.mubr.f32.gmra.mrb[0].mxu0 %v408
        %v503 = vpop.f32.mrb[0].mxu0
        %v504 = vadd.f32 %v371, %v503
        %v505 = vpop.f32.mrb[0].mxu0
        %506 = vmatprep.mubr.f32.mxu0 0.0
        %507 = vmatmul.mubr.f32.gmra.mrb[0].mxu0 %v411
        %v508 = vpop.f32.mrb[0].mxu0
        %v509 = vadd.f32 %v376, %v508
        %v510 = vpop.f32.mrb[0].mxu0
        %511 = vmatprep.mubr.f32.mxu0 0.0
        %512 = vmatmul.mubr.f32.gmra.mrb[0].mxu0 %v414
        %v513 = vpop.f32.mrb[0].mxu0
        %v514 = vadd.f32 %v381, %v513
        %v515 = vpop.f32.mrb[0].mxu0
        %516 = vmatprep.mubr.f32.mxu0 0.0
        %517 = vmatmul.mubr.f32.gmra.mrb[0].mxu0 %v417
        %v518 = vpop.f32.mrb[0].mxu0
        %v519 = vadd.f32 %v386, %v518
        %v520 = vpop.f32.mrb[0].mxu0
        %521 = vmatprep.mubr.f32.mxu0 0.0
        %522 = vmatmul.mubr.f32.gmra.mrb[0].mxu0 %v420
        %v523 = vpop.f32.mrb[0].mxu0
        %v524 = vadd.f32 %v391, %v523
        %v525 = vpop.f32.mrb[0].mxu0
        %526 = vmatprep.mubr.f32.mxu0 0.0
        %527 = vmatmul.mubr.f32.gmra.mrb[0].mxu0 %v423
        %v528 = vpop.f32.mrb[0].mxu0
        %v529 = vadd.f32 %v396, %v528
        %v530 = vpop.f32.mrb[0].mxu0
        %531 = vmatprep.mubr.f32.mxu0 0.0
        %532 = vmatmul.mubr.f32.gmra.mrb[0].mxu0 %v426
        %v533 = vpop.f32.mrb[0].mxu0
        %v534 = vadd.f32 %v401, %v533
        %v535 = vpop.f32.mrb[0].mxu0
        %536 = vdwg.mxu0
        %vm537 = vcmp.gt.f32.partialorder %v499, 0.0
        %vm538 = vcmp.gt.f32.partialorder %v504, 0.0
        %vm539 = vcmp.gt.f32.partialorder %v509, 0.0
        %vm540 = vcmp.gt.f32.partialorder %v514, 0.0
        %vm541 = vcmp.gt.f32.partialorder %v519, 0.0
        %vm542 = vcmp.gt.f32.partialorder %v524, 0.0
        %vm543 = vcmp.gt.f32.partialorder %v529, 0.0
        %vm544 = vcmp.gt.f32.partialorder %v534, 0.0
        %v545 = vmul.f32 %v499, 0.2
        %v546 = vmul.f32 %v504, 0.2
        %v547 = vmul.f32 %v509, 0.2
        %v548 = vmul.f32 %v514, 0.2
        %v549 = vmul.f32 %v519, 0.2
        %v550 = vmul.f32 %v524, 0.2
        %v551 = vmul.f32 %v529, 0.2
        %v552 = vmul.f32 %v534, 0.2
        %v553 = vsel %vm537, %v499, %v545
        %v554 = vsel %vm538, %v504, %v546
        %v555 = vsel %vm539, %v509, %v547
        %v556 = vsel %vm540, %v514, %v548
        %v557 = vsel %vm541, %v519, %v549
        %v558 = vsel %vm542, %v524, %v550
        %v559 = vsel %vm543, %v529, %v551
        %v560 = vsel %vm544, %v534, %v552
        %s561 = scalar_lea.vmem %s4, %s344
        %v562 = vld [vmem:[%s561] sm:$0xff]
        %v563 = vld [vmem:[%s561 + $0x8] sm:$0xff]
        %v564 = vld [vmem:[%s561 + $0x10] sm:$0xff]
        %v565 = vld [vmem:[%s561 + $0x18] sm:$0xff]
        %v566 = vld [vmem:[%s561 + $0x20] sm:$0xff]
        %v567 = vld [vmem:[%s561 + $0x28] sm:$0xff]
        %v568 = vld [vmem:[%s561 + $0x30] sm:$0xff]
        %v569 = vld [vmem:[%s561 + $0x38] sm:$0xff]
        %s570 = scalar_lea.vmem %s5, %s344
        %v571 = vld [vmem:[%s570] sm:$0xff]
        %v572 = vld [vmem:[%s570 + $0x8] sm:$0xff]
        %v573 = vld [vmem:[%s570 + $0x10] sm:$0xff]
        %v574 = vld [vmem:[%s570 + $0x18] sm:$0xff]
        %v575 = vld [vmem:[%s570 + $0x20] sm:$0xff]
        %v576 = vld [vmem:[%s570 + $0x28] sm:$0xff]
        %v577 = vld [vmem:[%s570 + $0x30] sm:$0xff]
        %v578 = vld [vmem:[%s570 + $0x38] sm:$0xff]
        %580 = vset.pattern.permute.xlu0 0
        %581 = vperm.xlu0 %580, %v571
        %v582 = vpop.permute.xlu0 %581
        %585 = vset.pattern.permute.xlu0 0
        %586 = vperm.xlu0 %585, %v572
        %v587 = vpop.permute.xlu0 %586
        %590 = vset.pattern.permute.xlu0 0
        %591 = vperm.xlu0 %590, %v573
        %v592 = vpop.permute.xlu0 %591
        %595 = vset.pattern.permute.xlu0 0
        %596 = vperm.xlu0 %595, %v574
        %v597 = vpop.permute.xlu0 %596
        %600 = vset.pattern.permute.xlu0 0
        %601 = vperm.xlu0 %600, %v575
        %v602 = vpop.permute.xlu0 %601
        %605 = vset.pattern.permute.xlu0 0
        %606 = vperm.xlu0 %605, %v576
        %v607 = vpop.permute.xlu0 %606
        %610 = vset.pattern.permute.xlu0 0
        %611 = vperm.xlu0 %610, %v577
        %v612 = vpop.permute.xlu0 %611
        %615 = vset.pattern.permute.xlu0 0
        %616 = vperm.xlu0 %615, %v578
        %v617 = vpop.permute.xlu0 %616
        %vm619 = vcmask 523264
        %v621 = vsel %vm619, %v562, 0
        %v624 = vsel %vm619, %v563, 0
        %v627 = vsel %vm619, %v564, 0
        %v630 = vsel %vm619, %v565, 0
        %v633 = vsel %vm619, %v566, 0
        %v636 = vsel %vm619, %v567, 0
        %v639 = vsel %vm619, %v568, 0
        %v642 = vsel %vm619, %v569, 0
        %644 = vmatprep.subr.mxu0 0.0
        %645 = vmatpush1.msra.mxu0 %v553
        %646 = vmatprep.subr.mxu0 0.0
        %647 = vmatpush1.msra.mxu0 %v554
        %648 = vmatprep.subr.mxu0 0.0
        %649 = vmatpush1.msra.mxu0 %v555
        %650 = vmatprep.subr.mxu0 0.0
        %651 = vmatpush1.msra.mxu0 %v556
        %652 = vmatprep.subr.mxu0 0.0
        %653 = vmatpush1.msra.mxu0 %v557
        %654 = vmatprep.subr.mxu0 0.0
        %655 = vmatpush1.msra.mxu0 %v558
        %656 = vmatprep.subr.mxu0 0.0
        %657 = vmatpush1.msra.mxu0 %v559
        %658 = vmatprep.subr.mxu0 0.0
        %659 = vmatpush1.msra.mxu0 %v560
        %660 = vmatprep.subr.mxu0 0.0
        %661 = vmatpush1.msra.mxu0 0.0
        %662 = vmatprep.subr.mxu0 0.0
        %663 = vmatpush1.msra.mxu0 0.0
        %664 = vmatprep.subr.mxu0 0.0
        %665 = vmatpush1.msra.mxu0 0.0
        %666 = vmatprep.subr.mxu0 0.0
        %667 = vmatpush1.msra.mxu0 0.0
        %668 = vmatprep.subr.mxu0 0.0
        %669 = vmatpush1.msra.mxu0 0.0
        %670 = vmatprep.subr.mxu0 0.0
        %671 = vmatpush1.msra.mxu0 0.0
        %672 = vmatprep.subr.mxu0 0.0
        %673 = vmatpush1.msra.mxu0 0.0
        %674 = vmatprep.subr.mxu0 0.0
        %675 = vmatpush1.msra.mxu0 0.0
        %676 = vmatprep.subr.mxu0 0.0
        %677 = vmatpush1.msra.mxu0 0.0
        %678 = vmatprep.subr.mxu0 0.0
        %679 = vmatpush1.msra.mxu0 0.0
        %680 = vmatprep.subr.mxu0 0.0
        %681 = vmatpush1.msra.mxu0 0.0
        %682 = vmatprep.subr.mxu0 0.0
        %683 = vmatpush1.msra.mxu0 0.0
        %684 = vmatprep.subr.mxu0 0.0
        %685 = vmatpush1.msra.mxu0 0.0
        %686 = vmatprep.subr.mxu0 0.0
        %687 = vmatpush1.msra.mxu0 0.0
        %688 = vmatprep.subr.mxu0 0.0
        %689 = vmatpush1.msra.mxu0 0.0
        %690 = vmatprep.subr.mxu0 0.0
        %691 = vmatpush1.msra.mxu0 0.0
        %692 = vmatprep.subr.mxu0 0.0
        %693 = vmatpush1.msra.mxu0 0.0
        %694 = vmatprep.subr.mxu0 0.0
        %695 = vmatpush1.msra.mxu0 0.0
        %696 = vmatprep.subr.mxu0 0.0
        %697 = vmatpush1.msra.mxu0 0.0
        %698 = vmatprep.subr.mxu0 0.0
        %699 = vmatpush1.msra.mxu0 0.0
        %700 = vmatprep.subr.mxu0 0.0
        %701 = vmatpush1.msra.mxu0 0.0
        %702 = vmatprep.subr.mxu0 0.0
        %703 = vmatpush1.msra.mxu0 0.0
        %704 = vmatprep.subr.mxu0 0.0
        %705 = vmatpush1.msra.mxu0 0.0
        %706 = vmatprep.subr.mxu0 0.0
        %707 = vmatpush1.msra.mxu0 0.0
        %708 = vmatprep.mubr.f32.mxu0 0.0
        %709 = vmatmul.mubr.f32.gmra.mrb[0].mxu0 %v621
        %v710 = vpop.f32.mrb[0].mxu0
        %v711 = vadd.f32 %v582, %v710
        %v712 = vpop.f32.mrb[0].mxu0
        %713 = vmatprep.mubr.f32.mxu0 0.0
        %714 = vmatmul.mubr.f32.gmra.mrb[0].mxu0 %v624
        %v715 = vpop.f32.mrb[0].mxu0
        %v716 = vadd.f32 %v587, %v715
        %v717 = vpop.f32.mrb[0].mxu0
        %718 = vmatprep.mubr.f32.mxu0 0.0
        %719 = vmatmul.mubr.f32.gmra.mrb[0].mxu0 %v627
        %v720 = vpop.f32.mrb[0].mxu0
        %v721 = vadd.f32 %v592, %v720
        %v722 = vpop.f32.mrb[0].mxu0
        %723 = vmatprep.mubr.f32.mxu0 0.0
        %724 = vmatmul.mubr.f32.gmra.mrb[0].mxu0 %v630
        %v725 = vpop.f32.mrb[0].mxu0
        %v726 = vadd.f32 %v597, %v725
        %v727 = vpop.f32.mrb[0].mxu0
        %728 = vmatprep.mubr.f32.mxu0 0.0
        %729 = vmatmul.mubr.f32.gmra.mrb[0].mxu0 %v633
        %v730 = vpop.f32.mrb[0].mxu0
        %v731 = vadd.f32 %v602, %v730
        %v732 = vpop.f32.mrb[0].mxu0
        %733 = vmatprep.mubr.f32.mxu0 0.0
        %734 = vmatmul.mubr.f32.gmra.mrb[0].mxu0 %v636
        %v735 = vpop.f32.mrb[0].mxu0
        %v736 = vadd.f32 %v607, %v735
        %v737 = vpop.f32.mrb[0].mxu0
        %738 = vmatprep.mubr.f32.mxu0 0.0
        %739 = vmatmul.mubr.f32.gmra.mrb[0].mxu0 %v639
        %v740 = vpop.f32.mrb[0].mxu0
        %v741 = vadd.f32 %v612, %v740
        %v742 = vpop.f32.mrb[0].mxu0
        %743 = vmatprep.mubr.f32.mxu0 0.0
        %744 = vmatmul.mubr.f32.gmra.mrb[0].mxu0 %v642
        %v745 = vpop.f32.mrb[0].mxu0
        %v746 = vadd.f32 %v617, %v745
        %v747 = vpop.f32.mrb[0].mxu0
        %748 = vdwg.mxu0
        %vm749 = vcmp.gt.f32.partialorder %v711, 0.0
        %vm750 = vcmp.gt.f32.partialorder %v716, 0.0
        %vm751 = vcmp.gt.f32.partialorder %v721, 0.0
        %vm752 = vcmp.gt.f32.partialorder %v726, 0.0
        %vm753 = vcmp.gt.f32.partialorder %v731, 0.0
        %vm754 = vcmp.gt.f32.partialorder %v736, 0.0
        %vm755 = vcmp.gt.f32.partialorder %v741, 0.0
        %vm756 = vcmp.gt.f32.partialorder %v746, 0.0
        %v757 = vmul.f32 %v711, 0.2
        %v758 = vmul.f32 %v716, 0.2
        %v759 = vmul.f32 %v721, 0.2
        %v760 = vmul.f32 %v726, 0.2
        %v761 = vmul.f32 %v731, 0.2
        %v762 = vmul.f32 %v736, 0.2
        %v763 = vmul.f32 %v741, 0.2
        %v764 = vmul.f32 %v746, 0.2
        %v765 = vsel %vm749, %v711, %v757
        %v766 = vsel %vm750, %v716, %v758
        %v767 = vsel %vm751, %v721, %v759
        %v768 = vsel %vm752, %v726, %v760
        %v769 = vsel %vm753, %v731, %v761
        %v770 = vsel %vm754, %v736, %v762
        %v771 = vsel %vm755, %v741, %v763
        %v772 = vsel %vm756, %v746, %v764
        %s773 = smul.u32 %s34, 4
        %s774 = scalar_lea.vmem %s6, %s773
        %v775 = vld [vmem:[%s774] sm:$0xf]
        %s776 = scalar_lea.vmem %s7, %s773
        %v777 = vld [vmem:[%s776] sm:$0xf]
        %779 = vset.pattern.permute.xlu0 0
        %780 = vperm.xlu0 %779, %v777
        %v781 = vpop.permute.xlu0 %780
        %v784 = vsel %vm619, %v775, 0
        %786 = vmatprep.subr.mxu0 0.0
        %787 = vmatpush1.msra.mxu0 %v765
        %788 = vmatprep.subr.mxu0 0.0
        %789 = vmatpush1.msra.mxu0 %v766
        %790 = vmatprep.subr.mxu0 0.0
        %791 = vmatpush1.msra.mxu0 %v767
        %792 = vmatprep.subr.mxu0 0.0
        %793 = vmatpush1.msra.mxu0 %v768
        %794 = vmatprep.subr.mxu0 0.0
        %795 = vmatpush1.msra.mxu0 %v769
        %796 = vmatprep.subr.mxu0 0.0
        %797 = vmatpush1.msra.mxu0 %v770
        %798 = vmatprep.subr.mxu0 0.0
        %799 = vmatpush1.msra.mxu0 %v771
        %800 = vmatprep.subr.mxu0 0.0
        %801 = vmatpush1.msra.mxu0 %v772
        %802 = vmatprep.subr.mxu0 0.0
        %803 = vmatpush1.msra.mxu0 0.0
        %804 = vmatprep.subr.mxu0 0.0
        %805 = vmatpush1.msra.mxu0 0.0
        %806 = vmatprep.subr.mxu0 0.0
        %807 = vmatpush1.msra.mxu0 0.0
        %808 = vmatprep.subr.mxu0 0.0
        %809 = vmatpush1.msra.mxu0 0.0
        %810 = vmatprep.subr.mxu0 0.0
        %811 = vmatpush1.msra.mxu0 0.0
        %812 = vmatprep.subr.mxu0 0.0
        %813 = vmatpush1.msra.mxu0 0.0
        %814 = vmatprep.subr.mxu0 0.0
        %815 = vmatpush1.msra.mxu0 0.0
        %816 = vmatprep.subr.mxu0 0.0
        %817 = vmatpush1.msra.mxu0 0.0
        %818 = vmatprep.subr.mxu0 0.0
        %819 = vmatpush1.msra.mxu0 0.0
        %820 = vmatprep.subr.mxu0 0.0
        %821 = vmatpush1.msra.mxu0 0.0
        %822 = vmatprep.subr.mxu0 0.0
        %823 = vmatpush1.msra.mxu0 0.0
        %824 = vmatprep.subr.mxu0 0.0
        %825 = vmatpush1.msra.mxu0 0.0
        %826 = vmatprep.subr.mxu0 0.0
        %827 = vmatpush1.msra.mxu0 0.0
        %828 = vmatprep.subr.mxu0 0.0
        %829 = vmatpush1.msra.mxu0 0.0
        %830 = vmatprep.subr.mxu0 0.0
        %831 = vmatpush1.msra.mxu0 0.0
        %832 = vmatprep.subr.mxu0 0.0
        %833 = vmatpush1.msra.mxu0 0.0
        %834 = vmatprep.subr.mxu0 0.0
        %835 = vmatpush1.msra.mxu0 0.0
        %836 = vmatprep.subr.mxu0 0.0
        %837 = vmatpush1.msra.mxu0 0.0
        %838 = vmatprep.subr.mxu0 0.0
        %839 = vmatpush1.msra.mxu0 0.0
        %840 = vmatprep.subr.mxu0 0.0
        %841 = vmatpush1.msra.mxu0 0.0
        %842 = vmatprep.subr.mxu0 0.0
        %843 = vmatpush1.msra.mxu0 0.0
        %844 = vmatprep.subr.mxu0 0.0
        %845 = vmatpush1.msra.mxu0 0.0
        %846 = vmatprep.subr.mxu0 0.0
        %847 = vmatpush1.msra.mxu0 0.0
        %848 = vmatprep.subr.mxu0 0.0
        %849 = vmatpush1.msra.mxu0 0.0
        %850 = vmatprep.mubr.f32.mxu0 0.0
        %851 = vmatmul.mubr.f32.gmra.mrb[0].mxu0 %v784
        %v852 = vpop.f32.mrb[0].mxu0
        %v853 = vadd.f32 %v781, %v852
        %v854 = vpop.f32.mrb[0].mxu0
        %855 = vdwg.mxu0
        %v856 = vmul.f32 %v853, 1.442695
        %v857 = vpow.pop %v856
        %v858 = vmul.f32 %v857, %v343
        %v860 = vrot.slane %v853, 2
        %v862 = vadd.f32 %v858, %v860
        %v863 = vsel %vm341, %v342, %v862
        %v864 = vsel %vm341, %v862, %v342
        %v866 = vrot.slane %v864, 6
        %v868 = vsel %vm428, %v863, %v866
        %869 = vst [vmem:[#allocation2] sm:$0xf] %v868
        %vm870 = vcmask 1043456
        %v871 = vsel %vm870, %v868, 0.0
        %s872 = smul.u32 %s34, 8
        %s873 = scalar_lea.vmem [#allocation5], %s872
        %874 = vst [vmem:[%s873] sm:$0xff] %v871
        %v875 = vld [vmem:[#allocation7] sm:$0x1]
        %v876 = vsel %vm428, %v853, 0.0
        %v877 = vrot.slane %v876, 4
        %v878 = vadd.f32 %v876, %v877
        %v879 = vrot.slane %v878, 2
        %v880 = vadd.f32 %v878, %v879
        %v881 = vrot.slane %v880, 1
        %v882 = vadd.f32 %v880, %v881
        %v883 = vadd.f32 %v875, %v882
        %884 = vst [vmem:[#allocation7] sm:$0x1] %v883
        // Predicated region
        $region53: #{tpu_custom_call.1} parent=47 // pred_check
          %p885 = pneg %p211
        $region54: #{tpu_custom_call.1} parent=47 // pred_check_branch
          %887 = sbr.rel (%p885) target = $region56
        $region55: #{tpu_custom_call.1} parent=47 // pred_region
          %s889 = ssub.s32 512, 512
          %890 = vsyncadd [#allocation6], %s889
          %s891 = smul.addr %s33, 128
          %s892 = scalar_lea.hbm %s8, %s891
          %s893 = sshll.u32 [#allocation5], 4
          %s894 = int_to_ptr.vmem [resolvable:$true] %s893
          %899 = dma.vmem_to_hbm [thread:$0]  %s894, 512, %s892, [#allocation6], 128, 128, 8
        $region56: #{tpu_custom_call.1} parent=47 // pred_fallthru
          _
        // Predicated region
        $region57: #{tpu_custom_call.1} parent=47 // pred_check
          %p900 = pneg %p237
        $region58: #{tpu_custom_call.1} parent=47 // pred_check_branch
          %902 = sbr.rel (%p900) target = $region60
        $region59: #{tpu_custom_call.1} parent=47 // pred_region
          %s904 = ssub.s32 16, 16
          %905 = vsyncadd [#allocation8], %s904
          %s906 = smul.addr %s33, 16
          %s907 = scalar_lea.hbm %s9, %s906
          %s909 = sshll.u32 [#allocation7], 4
          %s910 = int_to_ptr.vmem [resolvable:$true] %s909
          %912 = dma.vmem_to_hbm [thread:$0]  %s910, 16, %s907, [#allocation8]
        $region60: #{tpu_custom_call.1} parent=47 // pred_fallthru
          _
        // Predicated region
        $region61: #{tpu_custom_call.1} parent=47 // pred_check
          %p913 = pneg %p211
        $region62: #{tpu_custom_call.1} parent=47 // pred_check_branch
          %915 = sbr.rel (%p913) target = $region64
        $region63: #{tpu_custom_call.1} parent=47 // pred_region
          %916 = dma.done [#allocation6], 512
        $region64: #{tpu_custom_call.1} parent=47 // pred_fallthru
          _
        // Predicated region
        $region65: #{tpu_custom_call.1} parent=47 // pred_check
          %p917 = pneg %p237
        $region66: #{tpu_custom_call.1} parent=47 // pred_check_branch
          %919 = sbr.rel (%p917) target = $region68
        $region67: #{tpu_custom_call.1} parent=47 // pred_region
          %920 = dma.done [#allocation8], 16
        $region68: #{tpu_custom_call.1} parent=47 // pred_fallthru
          _
      $region48: #{tpu_custom_call.1} parent=5 // pred_fallthru
        _
      %p921 = scmp.le.s32.totalorder 2, %s24
      // Predicated region
      $region69: #{tpu_custom_call.1} parent=5 // pred_check
        %p922 = pneg %p921
      $region70: #{tpu_custom_call.1} parent=5 // pred_check_branch
        %924 = sbr.rel (%p922) target = $region72
      $region71: #{tpu_custom_call.1} parent=5 // pred_region
        %s925 = ssub.s32 %s24, 2
      $region72: #{tpu_custom_call.1} parent=5 // pred_fallthru
        _
    $region6: #{tpu_custom_call.1} parent=1 // loop_footer
      %s28 = sadd.s32 1, %s24
    $region7: #{tpu_custom_call.1} parent=1 // loop_footer_branch
      %23 = sbr.rel target = $region3
    $region8: #{tpu_custom_call.1} parent=1 // loop_exit
      _
    %926 = vsyncpa [#allocation6], 1
    %s927 = scalar_lea.sflag [#allocation6], 1
    %928 = vsyncpa %s927, 1
    %929 = vsyncpa [#allocation8], 1

</llo_original>
